<compile_context>
chip_gen: v6e
topology: v6e:2x2x1
jax: 0.10.0
libtpu: 0.0.40
codegen_flags: <defaults>
</compile_context>

<pallas_src>
import jax
import jax.numpy as jnp
from jax.experimental import pallas as pl
from jax.experimental.pallas import tpu as pltpu

THRESH1 = 1.0  # module default thresh1=1

# Per-input tile budget (bytes).  2 inputs x 2 pipeline buffers x 2 MiB = 8 MiB
# resident, which fits under v5e's 16 MiB default scoped VMEM and is far below
# v6e/v7x limits, so double-buffering survives on every generation.
_TILE_BYTES_BUDGET = 2 * 1024 * 1024
_MAX_ROWS_TILE = 1024


def _round_up(x, m):
    return ((x + m - 1) // m) * m


def _pick_rows_tile(rows, cols, itemsize):
    """Largest multiple-of-8 row tile that fits the VMEM budget.

    Prefers a tile that divides the (8-rounded) row count so no padding copy is
    needed; falls back to the budget-sized tile (with zero padding) otherwise.
    """
    max_rows = (_TILE_BYTES_BUDGET // max(1, cols * itemsize)) // 8 * 8
    max_rows = max(8, min(_MAX_ROWS_TILE, max_rows))
    rows8 = _round_up(rows, 8)
    if rows8 <= max_rows:
        return rows8
    # Prefer an exact divisor (multiple of 8) of rows8 to avoid padding.
    for cand in range(max_rows, 7, -8):
        if rows8 % cand == 0 and cand >= 128:
            return cand
    return max_rows


def _joints_l2_kernel(pred_ref, lab_ref, val_ref, out_ref):
    # pred_ref/lab_ref block: (rows_tile, S); val_ref block: (rows_tile, 1)
    # out_ref block: (rows_tile, 1) per-row partial sum of squared error.
    pred = pred_ref[...].astype(jnp.float32)
    lab = lab_ref[...].astype(jnp.float32)
    weight = (val_ref[...].astype(jnp.float32) > THRESH1).astype(jnp.float32)
    diff = pred - lab * weight            # weight broadcasts over the lane axis
    out_ref[...] = jnp.sum(diff * diff, axis=1, keepdims=True)


def joints_l2_loss(output, valid, label):
    """output, label: (B, K, H, W); valid: (B, K, 1). Returns scalar f32 loss."""
    assert output.shape == label.shape
    B, K, H, W = output.shape
    S = H * W
    R = B * K

    # Free, layout-preserving reshapes -- NO dtype upcast here.
    pred2d = output.reshape(R, S)
    lab2d = label.reshape(R, S)
    val2d = valid.reshape(R, 1)

    itemsize = jnp.dtype(output.dtype).itemsize
    rows_tile = _pick_rows_tile(R, S, itemsize)
    R_pad = _round_up(R, rows_tile)
    if R_pad > R:
        # Zero padding is exact: pred=0, label=0, valid=0 -> weight=0 -> diff=0.
        pad = R_pad - R
        pred2d = jnp.pad(pred2d, ((0, pad), (0, 0)))
        lab2d = jnp.pad(lab2d, ((0, pad), (0, 0)))
        val2d = jnp.pad(val2d, ((0, pad), (0, 0)))

    grid = (R_pad // rows_tile,)
    val_itemsize = jnp.dtype(valid.dtype).itemsize

    partials = pl.pallas_call(
        _joints_l2_kernel,
        out_shape=jax.ShapeDtypeStruct((R_pad, 1), jnp.float32),
        grid_spec=pltpu.PrefetchScalarGridSpec(
            num_scalar_prefetch=0,
            grid=grid,
            in_specs=[
                pl.BlockSpec((rows_tile, S), lambda i: (i, 0)),
                pl.BlockSpec((rows_tile, S), lambda i: (i, 0)),
                pl.BlockSpec((rows_tile, 1), lambda i: (i, 0)),
            ],
            out_specs=pl.BlockSpec((rows_tile, 1), lambda i: (i, 0)),
        ),
        compiler_params=pltpu.CompilerParams(
            # Each grid step writes its own output block -> fully parallel;
            # on v7x this lets both TensorCores split the reduction.
            dimension_semantics=("parallel",),
        ),
        cost_estimate=pl.CostEstimate(
            flops=3 * R * S,
            transcendentals=0,
            bytes_accessed=2 * R * S * itemsize + R * val_itemsize + R_pad * 4,
        ),
    )(pred2d, lab2d, val2d)

    # Padded rows contribute exactly 0; divide by the TRUE element count.
    # (mean over (K,S) per sample, then mean over batch == total / (B*K*S))
    return jnp.sum(partials) / jnp.float32(B * K * S)


def _reference(output, valid, label):
    B, K, H, W = output.shape
    pred = output.reshape(B, K, -1).astype(jnp.float32)
    gt = label.reshape(B, K, -1).astype(jnp.float32)
    w = (valid.reshape(B, K, 1).astype(jnp.float32) > THRESH1).astype(jnp.float32)
    gt = gt * w
    per_sample = jnp.mean((pred - gt) ** 2, axis=(1, 2))
    return jnp.mean(per_sample)


if __name__ == "__main__":
    key = jax.random.PRNGKey(0)
    k1, k2, k3 = jax.random.split(key, 3)

    B, K, H, W = 2, 8, 16, 16
    output = jax.random.normal(k1, (B, K, H, W), dtype=jnp.float32)
    label = jax.random.normal(k2, (B, K, H, W), dtype=jnp.float32)
    # valid flags in {0, 1, 2}; weight = (valid > 1)
    valid = jax.random.randint(k3, (B, K, 1), 0, 3).astype(jnp.float32)

    loss = joints_l2_loss(output, valid, label)
    jax.block_until_ready(loss)

    ref = _reference(output, valid, label)
    assert jnp.allclose(loss, ref, rtol=1e-5, atol=1e-6), (loss, ref)

    print("KERNEL_OK")
</pallas_src>

<mosaic_0001>
module attributes {stable_mosaic.version = 11 : i64} {
  func.func @_joints_l2_kernel(%arg0: i32, %arg1: memref<16x256xf32, #tpu.memory_space<vmem>>, %arg2: memref<16x256xf32, #tpu.memory_space<vmem>>, %arg3: memref<16x1xf32, #tpu.memory_space<vmem>>, %arg4: memref<16x1xf32, #tpu.memory_space<vmem>>) attributes {dimension_semantics = [#tpu.dimension_semantics<parallel>], iteration_bounds = array<i64: 1>, scalar_prefetch = 0 : i64, scratch_operands = 0 : i64, tpu.core_type = #tpu.core_type<tc>, window_params = [{transform_indices = @transform_0, window_bounds = array<i64: 16, 256>}, {transform_indices = @transform_1, window_bounds = array<i64: 16, 256>}, {transform_indices = @transform_2, window_bounds = array<i64: 16, 1>}, {transform_indices = @transform_3, window_bounds = array<i64: 16, 1>}]} {
    %c0 = arith.constant 0 : index
    %c0_0 = arith.constant 0 : index
    %0 = vector.load %arg1[%c0, %c0_0] : memref<16x256xf32, #tpu.memory_space<vmem>>, vector<16x256xf32>
    %c0_1 = arith.constant 0 : index
    %c0_2 = arith.constant 0 : index
    %1 = vector.load %arg2[%c0_1, %c0_2] : memref<16x256xf32, #tpu.memory_space<vmem>>, vector<16x256xf32>
    %c0_3 = arith.constant 0 : index
    %c0_4 = arith.constant 0 : index
    %2 = vector.load %arg3[%c0_3, %c0_4] : memref<16x1xf32, #tpu.memory_space<vmem>>, vector<16x1xf32>
    %cst = arith.constant 1.000000e+00 : f32
    %3 = vector.broadcast %cst : f32 to vector<16x1xf32>
    %4 = arith.cmpf ogt, %2, %3 : vector<16x1xf32>
    %5 = arith.extui %4 : vector<16x1xi1> to vector<16x1xi32>
    %6 = arith.sitofp %5 : vector<16x1xi32> to vector<16x1xf32>
    %7 = vector.broadcast %6 : vector<16x1xf32> to vector<16x256xf32>
    %8 = arith.mulf %1, %7 : vector<16x256xf32>
    %9 = arith.subf %0, %8 : vector<16x256xf32>
    %10 = arith.mulf %9, %9 : vector<16x256xf32>
    %cst_5 = arith.constant dense<0.000000e+00> : vector<16xf32>
    %11 = vector.multi_reduction <add>, %10, %cst_5 [1] : vector<16x256xf32> to vector<16xf32>
    %12 = vector.shape_cast %11 : vector<16xf32> to vector<16x1xf32>
    %c0_6 = arith.constant 0 : index
    %c0_7 = arith.constant 0 : index
    %13 = vector.load %arg4[%c0_6, %c0_7] : memref<16x1xf32, #tpu.memory_space<vmem>>, vector<16x1xf32>
    tpu.vector_store %arg4[%c0_6, %c0_7], %12 {strides = array<i32>} : memref<16x1xf32, #tpu.memory_space<vmem>>, vector<16x1xf32>,
    return
  }
  func.func @transform_0(%arg0: i32) -> (i32, i32) {
    %c0_i32 = arith.constant 0 : i32
    %c0_i32_0 = arith.constant 0 : i32
    return %arg0, %c0_i32 : i32, i32
  }
  func.func @transform_1(%arg0: i32) -> (i32, i32) {
    %c0_i32 = arith.constant 0 : i32
    %c0_i32_0 = arith.constant 0 : i32
    return %arg0, %c0_i32 : i32, i32
  }
  func.func @transform_2(%arg0: i32) -> (i32, i32) {
    %c0_i32 = arith.constant 0 : i32
    %c0_i32_0 = arith.constant 0 : i32
    return %arg0, %c0_i32 : i32, i32
  }
  func.func @transform_3(%arg0: i32) -> (i32, i32) {
    %c0_i32 = arith.constant 0 : i32
    %c0_i32_0 = arith.constant 0 : i32
    return %arg0, %c0_i32 : i32, i32
  }
}

</mosaic_0001>

<llo_original>
// kernel: tpu_custom_call.1
$region0: #{tpu_custom_call.1}
  #allocation0 [shape = 'u32[]', space=smem, size = 0x4, offset = 0x4, fixed_abs, tag = 'smem constant byte address 0x4 - core index']
  #allocation1 [shape = 'u32[144,128]{1,0:T(1,128)}', space=vmem, size = 0x12000, scoped, tag = 'internal scratch']
  %s0 = inlined_call_operand.hbm [shape: f32[16,256], index: 0, kind: input, shape index: {}]
  %s1 = inlined_call_operand.hbm [shape: f32[16,256], index: 1, kind: input, shape index: {}]
  %s2 = inlined_call_operand.vmem [shape: f32[16,1], index: 2, kind: input, shape index: {}]
  %s3 = inlined_call_operand.vmem [shape: f32[16,1], index: 3, kind: output, shape index: {}]
  %s4 = sld [smem:[#allocation0]]
  $region30: #{tpu_custom_call.1} parent=0
    _
  %s6 = ssub.s32 1, %s4
  %s7 = scalar_select 0, %s6, %s4
  $region1: #{tpu_custom_call.1} parent=0
    #allocation2 [shape = 'u8[16384]{0}', space=vmem, size = 0x4000, scoped, tag = 'input window, operand 0, single buffered']
    #allocation3 [shape = 's32[1]{0}', space=sflag, size = 0x4, scoped, tag = 'scoped memory for tpu_custom_call.1']
    #allocation4 [shape = 'u8[16384]{0}', space=vmem, size = 0x4000, scoped, tag = 'input window, operand 1, single buffered']
    #allocation5 [shape = 's32[1]{0}', space=sflag, size = 0x4, scoped, tag = 'scoped memory for tpu_custom_call.1']
    %8 = vsyncpa [#allocation3], 0
    %9 = vsyncpa [#allocation5], 0
    // Predicated region
    $region2: #{tpu_custom_call.1} parent=1 // pred_check
      _
    $region3: #{tpu_custom_call.1} parent=1 // pred_check_branch
      %11 = sbr.rel (0) target = $region5
    $region4: #{tpu_custom_call.1} parent=1 // pred_region
      %s13 = ssub.s32 512, 512
      %14 = vsyncadd [#allocation3], %s13
      %s15 = sshll.u32 [#allocation2], 4
      %s16 = int_to_ptr.vmem [resolvable:$true] %s15
      %21 = dma.hbm_to_vmem [thread:$0]  %s0, 512, %s16, [#allocation3], 256, 256, 16
    $region5: #{tpu_custom_call.1} parent=1 // pred_fallthru
      _
    // Predicated region
    $region6: #{tpu_custom_call.1} parent=1 // pred_check
      _
    $region7: #{tpu_custom_call.1} parent=1 // pred_check_branch
      %23 = sbr.rel (0) target = $region9
    $region8: #{tpu_custom_call.1} parent=1 // pred_region
      %s25 = ssub.s32 512, 512
      %26 = vsyncadd [#allocation5], %s25
      %s27 = sshll.u32 [#allocation4], 4
      %s28 = int_to_ptr.vmem [resolvable:$true] %s27
      %33 = dma.hbm_to_vmem [thread:$0]  %s1, 512, %s28, [#allocation5], 256, 256, 16
    $region9: #{tpu_custom_call.1} parent=1 // pred_fallthru
      _
    // Predicated region
    $region10: #{tpu_custom_call.1} parent=1 // pred_check
      _
    $region11: #{tpu_custom_call.1} parent=1 // pred_check_branch
      %35 = sbr.rel (0) target = $region13
    $region12: #{tpu_custom_call.1} parent=1 // pred_region
      _
    $region13: #{tpu_custom_call.1} parent=1 // pred_fallthru
      _
    // Predicated region
    $region14: #{tpu_custom_call.1} parent=1 // pred_check
      _
    $region15: #{tpu_custom_call.1} parent=1 // pred_check_branch
      %37 = sbr.rel (0) target = $region17
    $region16: #{tpu_custom_call.1} parent=1 // pred_region
      %38 = dma.done [#allocation3], 512
    $region17: #{tpu_custom_call.1} parent=1 // pred_fallthru
      _
    // Predicated region
    $region18: #{tpu_custom_call.1} parent=1 // pred_check
      _
    $region19: #{tpu_custom_call.1} parent=1 // pred_check_branch
      %40 = sbr.rel (0) target = $region21
    $region20: #{tpu_custom_call.1} parent=1 // pred_region
      %41 = dma.done [#allocation5], 512
    $region21: #{tpu_custom_call.1} parent=1 // pred_fallthru
      _
    %v42 = vld [vmem:[#allocation2] sm:$0xff]
    %v43 = vld [vmem:[#allocation2 + $0x8] sm:$0xff]
    %v44 = vld [vmem:[#allocation2 + $0x10] sm:$0xff]
    %v45 = vld [vmem:[#allocation2 + $0x18] sm:$0xff]
    %v46 = vld [vmem:[#allocation4] sm:$0xff]
    %v47 = vld [vmem:[#allocation4 + $0x8] sm:$0xff]
    %v48 = vld [vmem:[#allocation4 + $0x10] sm:$0xff]
    %v49 = vld [vmem:[#allocation4 + $0x18] sm:$0xff]
    %v50 = vld [vmem:[%s2] sm:$0xff]
    %v51 = vld [vmem:[%s2 + $0x8] sm:$0xff]
    %vm52 = vcmp.gt.f32.partialorder %v50, 1.0
    %vm53 = vcmp.gt.f32.partialorder %v51, 1.0
    %v54 = vsel %vm52, 1, 0
    %v55 = vsel %vm53, 1, 0
    %v56 = vcvt.s32.f32 %v54
    %v57 = vcvt.s32.f32 %v55
    %59 = vset.pattern.permute.xlu0 0
    %60 = vperm.xlu0 %59, %v56
    %v61 = vpop.permute.xlu0 %60
    %64 = vset.pattern.permute.xlu0 0
    %65 = vperm.xlu0 %64, %v57
    %v66 = vpop.permute.xlu0 %65
    %v68 = vmul.f32 %v46, %v61
    %v69 = vmul.f32 %v47, %v61
    %v70 = vmul.f32 %v48, %v66
    %v71 = vmul.f32 %v49, %v66
    %v72 = vsub.f32 %v42, %v68
    %v73 = vsub.f32 %v43, %v69
    %v74 = vsub.f32 %v44, %v70
    %v75 = vsub.f32 %v45, %v71
    %v76 = vmul.f32 %v72, %v72
    %v77 = vmul.f32 %v73, %v73
    %v78 = vmul.f32 %v74, %v74
    %v79 = vmul.f32 %v75, %v75
    %v80 = vadd.f32 %v76, %v77
    %81 = vadd.xlane.f32.xlu0 %v80
    %v82 = vpop.xlane.xlu0 %81
    %v83 = vadd.f32 %v78, %v79
    %84 = vadd.xlane.f32.xlu0 %v83
    %v85 = vpop.xlane.xlu0 %84
    %vm86 = vcmask 7168
    %87 = vst.msk [vmem:[%s3] sm:$0xff] %vm86, %v82
    %88 = vst.msk [vmem:[%s3 + $0x8] sm:$0xff] %vm86, %v85
    // Predicated region
    $region22: #{tpu_custom_call.1} parent=1 // pred_check
      _
    $region23: #{tpu_custom_call.1} parent=1 // pred_check_branch
      %90 = sbr.rel (0) target = $region25
    $region24: #{tpu_custom_call.1} parent=1 // pred_region
      _
    $region25: #{tpu_custom_call.1} parent=1 // pred_fallthru
      _
    // Predicated region
    $region26: #{tpu_custom_call.1} parent=1 // pred_check
      _
    $region27: #{tpu_custom_call.1} parent=1 // pred_check_branch
      %92 = sbr.rel (0) target = $region29
    $region28: #{tpu_custom_call.1} parent=1 // pred_region
      _
    $region29: #{tpu_custom_call.1} parent=1 // pred_fallthru
      _
    %93 = vsyncpa [#allocation3], 1
    %94 = vsyncpa [#allocation5], 1

</llo_original>
